<compile_context>
chip_gen: v6e
topology: v6e:2x2x1
jax: 0.10.0
libtpu: 0.0.40
codegen_flags: <defaults>
</compile_context>

<pallas_src>
import functools

import jax
import jax.numpy as jnp
from jax.experimental import pallas as pl
from jax.experimental.pallas import tpu as pltpu

_SUBLANES = 8
_HEAD = 3          # logits per node
_HEAD_PAD = 8      # 3-wide head zero-padded to 8 lanes (small masked store)


def _round_up(n, m):
    return ((n + m - 1) // m) * m


def _choose_row_tile(m_rows, max_tile=2048):
    """Row tile: big enough to amortize per-step pipeline overhead, small
    enough to give >= 2 (even) grid steps so both v7x TensorCores run."""
    m_rows = max(int(m_rows), 1)
    if m_rows <= _SUBLANES:
        return _SUBLANES
    steps = max(2, pl.cdiv(m_rows, max_tile))
    if steps % 2:
        steps += 1
    return _round_up(pl.cdiv(m_rows, steps), _SUBLANES)


def _vmem_limit_bytes():
    """~75% of this generation's VMEM (64 MiB on v7x, 128 MiB on v5e/v6e)."""
    try:
        cap = getattr(pltpu.get_tpu_info(), "vmem_capacity_bytes", None)
        if cap:
            return int(cap) * 3 // 4
    except Exception:
        pass
    return 48 << 20   # safe on v7x's 64 MiB VMEM, conservative elsewhere


def _mlp_kernel(*refs, n_nodes):
    """One row tile of each node: relu(x @ W1 + b1) @ W2p + b2p -> (TM, 8)."""
    w1_ref, b1_ref, w2_ref, b2_ref = refs[:4]
    x_refs = refs[4:4 + n_nodes]
    o_refs = refs[4 + n_nodes:4 + 2 * n_nodes]

    compute_dtype = w1_ref.dtype          # weights pre-cast in the wrapper
    w1 = w1_ref[...]                      # (H, H)        compute_dtype
    w2 = w2_ref[...]                      # (H, 8)        compute_dtype
    b1 = b1_ref[...]                      # (1, H)        f32
    b2 = b2_ref[...]                      # (1, 8)        f32

    for x_ref, o_ref in zip(x_refs, o_refs):
        x = x_ref[...].astype(compute_dtype)
        h = jnp.dot(x, w1, preferred_element_type=jnp.float32)      # MXU
        h = jnp.maximum(h + b1, 0.0)                                 # VPU, f32
        y = jnp.dot(h.astype(compute_dtype), w2,
                    preferred_element_type=jnp.float32)              # MXU
        o_ref[...] = (y + b2).astype(o_ref.dtype)                    # (TM, 8)


def _dis_struct_in_pallas(prep, flats):
    """Apply Linear(H,H)->ReLU->Linear(H,3) to each (M, H) matrix in `flats`
    (all sharing the same M) in a single fused pallas_call.  Returns a list
    of (M, _HEAD_PAD) arrays; the caller slices off the padding lanes."""
    w1, b1r, w2p, b2p = prep["w1"], prep["b1r"], prep["w2p"], prep["b2p"]
    H = w1.shape[0]
    n_nodes = len(flats)
    M = flats[0].shape[0]
    out_dtype = flats[0].dtype

    TM = _choose_row_tile(M)
    grid = (pl.cdiv(M, TM),)   # ragged last block: Pallas masks the writeback

    act_isz = jnp.dtype(out_dtype).itemsize
    w_isz = jnp.dtype(w1.dtype).itemsize
    flops = n_nodes * (2 * M * H * H + 2 * M * H * _HEAD_PAD)
    bytes_accessed = (w_isz * (H * H + H * _HEAD_PAD) + 4 * (H + _HEAD_PAD)
                      + act_isz * n_nodes * M * (H + _HEAD_PAD))

    weight_specs = [
        pl.BlockSpec((H, H), lambda i: (0, 0)),          # W1 (resident)
        pl.BlockSpec((1, H), lambda i: (0, 0)),          # b1 (resident)
        pl.BlockSpec((H, _HEAD_PAD), lambda i: (0, 0)),  # W2 padded (resident)
        pl.BlockSpec((1, _HEAD_PAD), lambda i: (0, 0)),  # b2 padded (resident)
    ]
    x_specs = [pl.BlockSpec((TM, H), lambda i: (i, 0)) for _ in range(n_nodes)]
    out_specs = [pl.BlockSpec((TM, _HEAD_PAD), lambda i: (i, 0))
                 for _ in range(n_nodes)]
    out_shape = [jax.ShapeDtypeStruct((M, _HEAD_PAD), out_dtype)
                 for _ in range(n_nodes)]

    outs = pl.pallas_call(
        functools.partial(_mlp_kernel, n_nodes=n_nodes),
        out_shape=out_shape,
        grid=grid,
        in_specs=weight_specs + x_specs,
        out_specs=out_specs,
        compiler_params=pltpu.CompilerParams(
            dimension_semantics=("parallel",),
            vmem_limit_bytes=_vmem_limit_bytes(),
        ),
        cost_estimate=pl.CostEstimate(
            flops=int(flops), transcendentals=0,
            bytes_accessed=int(bytes_accessed)),
    )(w1, b1r, w2p, b2p, *flats)

    return list(outs) if isinstance(outs, (list, tuple)) else [outs]


def prepare_dis_struct_in_params(params, compute_dtype=jnp.float32):
    """One-time weight prep for the kernel: reshape/pad biases and the 3-wide
    head, optionally cast the matmul weights (bf16 is MXU-native on v5e/v6e).
    Call once and reuse across forward passes."""
    H = params["in_w1"].shape[0]
    return {
        "w1": params["in_w1"].astype(compute_dtype),
        "b1r": params["in_b1"].reshape(1, H).astype(jnp.float32),
        "w2p": jnp.pad(params["in_w2"],
                       ((0, 0), (0, _HEAD_PAD - _HEAD))).astype(compute_dtype),
        "b2p": jnp.pad(params["in_b2"].reshape(1, _HEAD),
                       ((0, 0), (0, _HEAD_PAD - _HEAD))).astype(jnp.float32),
    }


def init_discriminator_params(key, hidden_size):
    """Deterministic synthetic init mirroring the module's parameter shapes."""
    ks = jax.random.split(key, 8)
    bound1 = 1.0 / jnp.sqrt(hidden_size)
    return {
        # Dis_struct_in: Linear(H,H) -> ReLU -> Linear(H,3)
        "in_w1": jax.random.uniform(ks[0], (hidden_size, hidden_size),
                                    jnp.float32, -bound1, bound1),
        "in_b1": jax.random.uniform(ks[1], (hidden_size,), jnp.float32,
                                    -bound1, bound1),
        "in_w2": jax.random.uniform(ks[2], (hidden_size, 3), jnp.float32,
                                    -bound1, bound1),
        "in_b2": jax.random.uniform(ks[3], (3,), jnp.float32, -bound1, bound1),
        # Dis_struct_out: LayerNorm(H) -> Linear(H,3)   (unused by forward)
        "out_ln_gamma": jnp.ones((hidden_size,), jnp.float32),
        "out_ln_beta": jnp.zeros((hidden_size,), jnp.float32),
        "out_w": jax.random.uniform(ks[4], (hidden_size, 3), jnp.float32,
                                    -bound1, bound1),
        "out_b": jax.random.uniform(ks[5], (3,), jnp.float32, -bound1, bound1),
    }


def discriminator_forward(params, node1, node2, node3, *, prepared=None,
                          compute_dtype=jnp.float32):
    """Equivalent of Discriminator.forward: the shared MLP applied to each
    node, executed as ONE fused Pallas call (3 inputs / 3 outputs) when the
    nodes share a shape, with no activation concat/pad in HBM."""
    prep = prepared if prepared is not None else \
        prepare_dis_struct_in_params(params, compute_dtype)
    nodes = (node1, node2, node3)
    H = prep["w1"].shape[0]
    flats = [n.reshape(-1, H) for n in nodes]
    if all(f.shape[0] == flats[0].shape[0] for f in flats):
        logits = _dis_struct_in_pallas(prep, flats)          # one fused call
    else:   # differently shaped nodes: one call per node (weights re-sent)
        logits = [_dis_struct_in_pallas(prep, [f])[0] for f in flats]
    return [l[:, :_HEAD].reshape(n.shape[:-1] + (_HEAD,))
            for l, n in zip(logits, nodes)]


def _reference_forward(params, node1, node2, node3):
    """Pure-JAX reference for correctness checking."""
    def mlp(x):
        h = jnp.maximum(x @ params["in_w1"] + params["in_b1"], 0.0)
        return h @ params["in_w2"] + params["in_b2"]
    return [mlp(node1), mlp(node2), mlp(node3)]


if __name__ == "__main__":
    # Module hardcodes hidden_size = 128 -> lane-dense H on TPU.
    batch, seq, hidden = 2, 8, 128
    key = jax.random.PRNGKey(0)
    k_params, k1, k2, k3 = jax.random.split(key, 4)

    params = init_discriminator_params(k_params, hidden)
    node1 = jax.random.normal(k1, (batch, seq, hidden), jnp.float32)
    node2 = jax.random.normal(k2, (batch, seq, hidden), jnp.float32)
    node3 = jax.random.normal(k3, (batch, seq, hidden), jnp.float32)

    ref = _reference_forward(params, node1, node2, node3)

    # Default f32 matmul path: tight numeric check.
    prep_f32 = prepare_dis_struct_in_params(params, jnp.float32)
    logits = discriminator_forward(params, node1, node2, node3,
                                   prepared=prep_f32)
    logits = [jax.block_until_ready(l) for l in logits]
    for got, want in zip(logits, ref):
        assert got.shape == (batch, seq, 3), got.shape
        assert jnp.allclose(got, want, atol=1e-4, rtol=1e-5)

    # bf16 matmul path (recommended on v5e/v6e; f32 accumulation) with a
    # tolerance appropriate for bf16 inputs.
    prep_bf16 = prepare_dis_struct_in_params(params, jnp.bfloat16)
    logits_bf16 = discriminator_forward(params, node1, node2, node3,
                                        prepared=prep_bf16)
    logits_bf16 = [jax.block_until_ready(l) for l in logits_bf16]
    for got, want in zip(logits_bf16, ref):
        assert got.shape == (batch, seq, 3), got.shape
        assert jnp.allclose(got, want, atol=5e-2, rtol=5e-2)

    print("KERNEL_OK")
</pallas_src>

<mosaic_0001>
module attributes {stable_mosaic.version = 11 : i64} {
  func.func @_mlp_kernel(%arg0: i32, %arg1: memref<128x128xf32, #tpu.memory_space<vmem>>, %arg2: memref<1x128xf32, #tpu.memory_space<vmem>>, %arg3: memref<128x8xf32, #tpu.memory_space<vmem>>, %arg4: memref<1x8xf32, #tpu.memory_space<vmem>>, %arg5: memref<8x128xf32, #tpu.memory_space<vmem>>, %arg6: memref<8x128xf32, #tpu.memory_space<vmem>>, %arg7: memref<8x128xf32, #tpu.memory_space<vmem>>, %arg8: memref<8x8xf32, #tpu.memory_space<vmem>>, %arg9: memref<8x8xf32, #tpu.memory_space<vmem>>, %arg10: memref<8x8xf32, #tpu.memory_space<vmem>>) attributes {dimension_semantics = [#tpu.dimension_semantics<parallel>], iteration_bounds = array<i64: 2>, scalar_prefetch = 0 : i64, scratch_operands = 0 : i64, tpu.core_type = #tpu.core_type<tc>, window_params = [{pipeline_mode = #tpu.pipeline_mode<synchronous>, transform_indices = @transform_0, window_bounds = array<i64: 128, 128>}, {pipeline_mode = #tpu.pipeline_mode<synchronous>, transform_indices = @transform_1, window_bounds = array<i64: 1, 128>}, {pipeline_mode = #tpu.pipeline_mode<synchronous>, transform_indices = @transform_2, window_bounds = array<i64: 128, 8>}, {pipeline_mode = #tpu.pipeline_mode<synchronous>, transform_indices = @transform_3, window_bounds = array<i64: 1, 8>}, {transform_indices = @transform_4, window_bounds = array<i64: 8, 128>}, {transform_indices = @transform_5, window_bounds = array<i64: 8, 128>}, {transform_indices = @transform_6, window_bounds = array<i64: 8, 128>}, {transform_indices = @transform_7, window_bounds = array<i64: 8, 8>}, {transform_indices = @transform_8, window_bounds = array<i64: 8, 8>}, {transform_indices = @transform_9, window_bounds = array<i64: 8, 8>}]} {
    %c0 = arith.constant 0 : index
    %c0_0 = arith.constant 0 : index
    %0 = vector.load %arg1[%c0, %c0_0] : memref<128x128xf32, #tpu.memory_space<vmem>>, vector<128x128xf32>
    %c0_1 = arith.constant 0 : index
    %c0_2 = arith.constant 0 : index
    %1 = vector.load %arg3[%c0_1, %c0_2] : memref<128x8xf32, #tpu.memory_space<vmem>>, vector<128x8xf32>
    %c0_3 = arith.constant 0 : index
    %c0_4 = arith.constant 0 : index
    %2 = vector.load %arg2[%c0_3, %c0_4] : memref<1x128xf32, #tpu.memory_space<vmem>>, vector<1x128xf32>
    %c0_5 = arith.constant 0 : index
    %c0_6 = arith.constant 0 : index
    %3 = vector.load %arg4[%c0_5, %c0_6] : memref<1x8xf32, #tpu.memory_space<vmem>>, vector<1x8xf32>
    %c0_7 = arith.constant 0 : index
    %c0_8 = arith.constant 0 : index
    %4 = vector.load %arg5[%c0_7, %c0_8] : memref<8x128xf32, #tpu.memory_space<vmem>>, vector<8x128xf32>
    %cst = arith.constant dense<0.000000e+00> : vector<8x128xf32>
    %5 = tpu.matmul %4, %0, %cst {dimension_numbers = #tpu.dot_dimension_numbers<[1], [0], [0], [1], [0, 0, 1, 1], [], []>} : vector<8x128xf32>, vector<128x128xf32>, vector<8x128xf32> -> vector<8x128xf32>
    %6 = vector.broadcast %2 : vector<1x128xf32> to vector<8x128xf32>
    %7 = arith.addf %5, %6 : vector<8x128xf32>
    %cst_9 = arith.constant 0.000000e+00 : f32
    %8 = vector.broadcast %cst_9 : f32 to vector<8x128xf32>
    %9 = arith.maximumf %7, %8 : vector<8x128xf32>
    %cst_10 = arith.constant dense<0.000000e+00> : vector<8x8xf32>
    %10 = tpu.matmul %9, %1, %cst_10 {dimension_numbers = #tpu.dot_dimension_numbers<[1], [0], [0], [1], [0, 0, 1, 1], [], []>} : vector<8x128xf32>, vector<128x8xf32>, vector<8x8xf32> -> vector<8x8xf32>
    %11 = vector.broadcast %3 : vector<1x8xf32> to vector<8x8xf32>
    %12 = arith.addf %10, %11 : vector<8x8xf32>
    %c0_11 = arith.constant 0 : index
    %c0_12 = arith.constant 0 : index
    %13 = vector.load %arg8[%c0_11, %c0_12] : memref<8x8xf32, #tpu.memory_space<vmem>>, vector<8x8xf32>
    tpu.vector_store %arg8[%c0_11, %c0_12], %12 {strides = array<i32>} : memref<8x8xf32, #tpu.memory_space<vmem>>, vector<8x8xf32>,
    %c0_13 = arith.constant 0 : index
    %c0_14 = arith.constant 0 : index
    %14 = vector.load %arg6[%c0_13, %c0_14] : memref<8x128xf32, #tpu.memory_space<vmem>>, vector<8x128xf32>
    %cst_15 = arith.constant dense<0.000000e+00> : vector<8x128xf32>
    %15 = tpu.matmul %14, %0, %cst_15 {dimension_numbers = #tpu.dot_dimension_numbers<[1], [0], [0], [1], [0, 0, 1, 1], [], []>} : vector<8x128xf32>, vector<128x128xf32>, vector<8x128xf32> -> vector<8x128xf32>
    %16 = vector.broadcast %2 : vector<1x128xf32> to vector<8x128xf32>
    %17 = arith.addf %15, %16 : vector<8x128xf32>
    %cst_16 = arith.constant 0.000000e+00 : f32
    %18 = vector.broadcast %cst_16 : f32 to vector<8x128xf32>
    %19 = arith.maximumf %17, %18 : vector<8x128xf32>
    %cst_17 = arith.constant dense<0.000000e+00> : vector<8x8xf32>
    %20 = tpu.matmul %19, %1, %cst_17 {dimension_numbers = #tpu.dot_dimension_numbers<[1], [0], [0], [1], [0, 0, 1, 1], [], []>} : vector<8x128xf32>, vector<128x8xf32>, vector<8x8xf32> -> vector<8x8xf32>
    %21 = vector.broadcast %3 : vector<1x8xf32> to vector<8x8xf32>
    %22 = arith.addf %20, %21 : vector<8x8xf32>
    %c0_18 = arith.constant 0 : index
    %c0_19 = arith.constant 0 : index
    %23 = vector.load %arg9[%c0_18, %c0_19] : memref<8x8xf32, #tpu.memory_space<vmem>>, vector<8x8xf32>
    tpu.vector_store %arg9[%c0_18, %c0_19], %22 {strides = array<i32>} : memref<8x8xf32, #tpu.memory_space<vmem>>, vector<8x8xf32>,
    %c0_20 = arith.constant 0 : index
    %c0_21 = arith.constant 0 : index
    %24 = vector.load %arg7[%c0_20, %c0_21] : memref<8x128xf32, #tpu.memory_space<vmem>>, vector<8x128xf32>
    %cst_22 = arith.constant dense<0.000000e+00> : vector<8x128xf32>
    %25 = tpu.matmul %24, %0, %cst_22 {dimension_numbers = #tpu.dot_dimension_numbers<[1], [0], [0], [1], [0, 0, 1, 1], [], []>} : vector<8x128xf32>, vector<128x128xf32>, vector<8x128xf32> -> vector<8x128xf32>
    %26 = vector.broadcast %2 : vector<1x128xf32> to vector<8x128xf32>
    %27 = arith.addf %25, %26 : vector<8x128xf32>
    %cst_23 = arith.constant 0.000000e+00 : f32
    %28 = vector.broadcast %cst_23 : f32 to vector<8x128xf32>
    %29 = arith.maximumf %27, %28 : vector<8x128xf32>
    %cst_24 = arith.constant dense<0.000000e+00> : vector<8x8xf32>
    %30 = tpu.matmul %29, %1, %cst_24 {dimension_numbers = #tpu.dot_dimension_numbers<[1], [0], [0], [1], [0, 0, 1, 1], [], []>} : vector<8x128xf32>, vector<128x8xf32>, vector<8x8xf32> -> vector<8x8xf32>
    %31 = vector.broadcast %3 : vector<1x8xf32> to vector<8x8xf32>
    %32 = arith.addf %30, %31 : vector<8x8xf32>
    %c0_25 = arith.constant 0 : index
    %c0_26 = arith.constant 0 : index
    %33 = vector.load %arg10[%c0_25, %c0_26] : memref<8x8xf32, #tpu.memory_space<vmem>>, vector<8x8xf32>
    tpu.vector_store %arg10[%c0_25, %c0_26], %32 {strides = array<i32>} : memref<8x8xf32, #tpu.memory_space<vmem>>, vector<8x8xf32>,
    return
  }
  func.func @transform_0(%arg0: i32) -> (i32, i32) {
    %c0_i32 = arith.constant 0 : i32
    %c0_i32_0 = arith.constant 0 : i32
    %c0_i32_1 = arith.constant 0 : i32
    return %c0_i32, %c0_i32_0 : i32, i32
  }
  func.func @transform_1(%arg0: i32) -> (i32, i32) {
    %c0_i32 = arith.constant 0 : i32
    %c0_i32_0 = arith.constant 0 : i32
    %c0_i32_1 = arith.constant 0 : i32
    return %c0_i32, %c0_i32_0 : i32, i32
  }
  func.func @transform_2(%arg0: i32) -> (i32, i32) {
    %c0_i32 = arith.constant 0 : i32
    %c0_i32_0 = arith.constant 0 : i32
    %c0_i32_1 = arith.constant 0 : i32
    return %c0_i32, %c0_i32_0 : i32, i32
  }
  func.func @transform_3(%arg0: i32) -> (i32, i32) {
    %c0_i32 = arith.constant 0 : i32
    %c0_i32_0 = arith.constant 0 : i32
    %c0_i32_1 = arith.constant 0 : i32
    return %c0_i32, %c0_i32_0 : i32, i32
  }
  func.func @transform_4(%arg0: i32) -> (i32, i32) {
    %c0_i32 = arith.constant 0 : i32
    %c0_i32_0 = arith.constant 0 : i32
    return %arg0, %c0_i32 : i32, i32
  }
  func.func @transform_5(%arg0: i32) -> (i32, i32) {
    %c0_i32 = arith.constant 0 : i32
    %c0_i32_0 = arith.constant 0 : i32
    return %arg0, %c0_i32 : i32, i32
  }
  func.func @transform_6(%arg0: i32) -> (i32, i32) {
    %c0_i32 = arith.constant 0 : i32
    %c0_i32_0 = arith.constant 0 : i32
    return %arg0, %c0_i32 : i32, i32
  }
  func.func @transform_7(%arg0: i32) -> (i32, i32) {
    %c0_i32 = arith.constant 0 : i32
    %c0_i32_0 = arith.constant 0 : i32
    return %arg0, %c0_i32 : i32, i32
  }
  func.func @transform_8(%arg0: i32) -> (i32, i32) {
    %c0_i32 = arith.constant 0 : i32
    %c0_i32_0 = arith.constant 0 : i32
    return %arg0, %c0_i32 : i32, i32
  }
  func.func @transform_9(%arg0: i32) -> (i32, i32) {
    %c0_i32 = arith.constant 0 : i32
    %c0_i32_0 = arith.constant 0 : i32
    return %arg0, %c0_i32 : i32, i32
  }
}

</mosaic_0001>

<llo_original>
// kernel: tpu_custom_call.1
$region0: #{tpu_custom_call.1}
  #allocation0 [shape = 'u32[]', space=smem, size = 0x4, offset = 0x4, fixed_abs, tag = 'smem constant byte address 0x4 - core index']
  #allocation1 [shape = 'u32[144,128]{1,0:T(1,128)}', space=vmem, size = 0x12000, scoped, tag = 'internal scratch']
  %s0 = inlined_call_operand.vmem [shape: f32[128,128], index: 0, kind: input, shape index: {}]
  %s1 = inlined_call_operand.vmem [shape: f32[1,128], index: 1, kind: input, shape index: {}]
  %s2 = inlined_call_operand.vmem [shape: f32[128,8], index: 2, kind: input, shape index: {}]
  %s3 = inlined_call_operand.hbm [shape: f32[1,8], index: 3, kind: input, shape index: {}]
  %s4 = inlined_call_operand.hbm [shape: f32[16,128], index: 4, kind: input, shape index: {}]
  %s5 = inlined_call_operand.vmem [shape: f32[16,128], index: 5, kind: input, shape index: {}]
  %s6 = inlined_call_operand.hbm [shape: f32[16,128], index: 6, kind: input, shape index: {}]
  %s7 = inlined_call_operand.vmem [shape: f32[16,8], index: 7, kind: output, shape index: {0}]
  %s8 = inlined_call_operand.vmem [shape: f32[16,8], index: 8, kind: output, shape index: {1}]
  %s9 = inlined_call_operand.vmem [shape: f32[16,8], index: 9, kind: output, shape index: {2}]
  %10 = xla_tuple %s7, %s8, %s9
  %s11 = sld [smem:[#allocation0]]
  $region89: #{tpu_custom_call.1} parent=0
    _
  %s13 = ssub.s32 1, %s11
  %s14 = scalar_select 0, %s13, %s11
  $region1: #{tpu_custom_call.1} parent=0
    #allocation2 [shape = 'u8[512]{0}', space=vmem, size = 0x400, scoped, tag = 'input window, operand 3, single buffered']
    #allocation3 [shape = 's32[2]{0}', space=sflag, size = 0x8, scoped, tag = 'scoped memory for tpu_custom_call.1']
    #allocation4 [shape = 'u8[8192]{0}', space=vmem, size = 0x2000, scoped, tag = 'input window, operand 4']
    #allocation5 [shape = 's32[2]{0}', space=sflag, size = 0x8, scoped, tag = 'scoped memory for tpu_custom_call.1']
    #allocation6 [shape = 'u8[8192]{0}', space=vmem, size = 0x2000, scoped, tag = 'input window, operand 6']
    %15 = vsyncpa [#allocation3], 0
    %16 = vsyncpa [#allocation5], 0
    %s17 = scalar_lea.sflag [#allocation5], 1
    %18 = vsyncpa %s17, 0
    loop: start=0, step=1, limit=4
    $region2: #{tpu_custom_call.1} parent=1 // loop_pre_header
      _
    $region3: #{tpu_custom_call.1} parent=1 // loop_header
      %s20 = sphi 0, %s24
      %p21 = scmp.ge.s32.totalorder %s20, 4
      %s28 = sphi 0, %s28
      %s30 = sphi 0, %s28
      %s31 = sphi 0, %s30
      %s45 = sphi 0, %s31
      %s49 = sphi 0, %s49
      %s51 = sphi 0, %s49
      %s52 = sphi 0, %s51
      %s66 = sphi 0, %s52
      %s70 = sphi 0, %s70
      %s72 = sphi 0, %s70
      %s73 = sphi 0, %s72
      %s87 = sphi 0, %s73
      %s91 = sphi 0, %s91
      %s93 = sphi 0, %s91
      %s94 = sphi 0, %s93
      %s108 = sphi 0, %s94
      %s114 = sphi 0, %s116
      %s117 = sphi 0, %s114
      %s118 = sphi 0, %s117
      %s134 = sphi 0, %s118
      %s140 = sphi 0, %s142
      %s143 = sphi 0, %s140
      %s144 = sphi 0, %s143
      %s160 = sphi 0, %s144
      %s166 = sphi 0, %s168
      %s169 = sphi 0, %s166
      %s170 = sphi 0, %s169
      %s186 = sphi 0, %s170
      %s192 = sphi 0, %s194
      %s195 = sphi 0, %s192
      %s196 = sphi 0, %s195
      %s212 = sphi 0, %s196
      %s218 = sphi 0, %s220
      %s221 = sphi 0, %s218
      %s222 = sphi 0, %s221
      %s238 = sphi 0, %s222
      %s244 = sphi 0, %s246
      %s247 = sphi 0, %s244
      %s248 = sphi 0, %s247
      %s264 = sphi 0, %s248
    $region4: #{tpu_custom_call.1} parent=1 // loop_header_branch
      %23 = sbr.rel (%p21) target = $region8
    $region5: #{tpu_custom_call.1} parent=1 // loop_body
      %s25 = ssub.s32 %s20, 1
      %s26 = ssub.s32 %s20, 2
      %s27 = sadd.s32 %s20, 1
      %s29 = sadd.s32 %s28, 1
      %p32 = scmp.eq.s32.totalorder %s20, 1
      %p33 = scmp.ne.s32.totalorder %s28, %s30
      %p34 = scmp.eq.s32.totalorder %s20, 0
      %p35 = por %p33, %p34
      %p36 = scmp.ne.s32.totalorder %s28, %s30
      %p37 = scmp.eq.s32.totalorder %s25, 1
      %p38 = por %p36, %p37
      %p39 = scmp.ne.s32.totalorder %s30, %s31
      %p40 = scmp.eq.s32.totalorder %s25, 0
      %p41 = por %p39, %p40
      %p42 = scmp.ne.s32.totalorder %s30, %s31
      %p43 = scmp.eq.s32.totalorder %s26, 1
      %p44 = por %p42, %p43
      %p46 = scmp.ne.s32.totalorder %s31, %s45
      %p47 = scmp.eq.s32.totalorder %s26, 0
      %p48 = por %p46, %p47
      %s50 = sadd.s32 %s49, 1
      %p53 = scmp.eq.s32.totalorder %s20, 1
      %p54 = scmp.ne.s32.totalorder %s49, %s51
      %p55 = scmp.eq.s32.totalorder %s20, 0
      %p56 = por %p54, %p55
      %p57 = scmp.ne.s32.totalorder %s49, %s51
      %p58 = scmp.eq.s32.totalorder %s25, 1
      %p59 = por %p57, %p58
      %p60 = scmp.ne.s32.totalorder %s51, %s52
      %p61 = scmp.eq.s32.totalorder %s25, 0
      %p62 = por %p60, %p61
      %p63 = scmp.ne.s32.totalorder %s51, %s52
      %p64 = scmp.eq.s32.totalorder %s26, 1
      %p65 = por %p63, %p64
      %p67 = scmp.ne.s32.totalorder %s52, %s66
      %p68 = scmp.eq.s32.totalorder %s26, 0
      %p69 = por %p67, %p68
      %s71 = sadd.s32 %s70, 1
      %p74 = scmp.eq.s32.totalorder %s20, 1
      %p75 = scmp.ne.s32.totalorder %s70, %s72
      %p76 = scmp.eq.s32.totalorder %s20, 0
      %p77 = por %p75, %p76
      %p78 = scmp.ne.s32.totalorder %s70, %s72
      %p79 = scmp.eq.s32.totalorder %s25, 1
      %p80 = por %p78, %p79
      %p81 = scmp.ne.s32.totalorder %s72, %s73
      %p82 = scmp.eq.s32.totalorder %s25, 0
      %p83 = por %p81, %p82
      %p84 = scmp.ne.s32.totalorder %s72, %s73
      %p85 = scmp.eq.s32.totalorder %s26, 1
      %p86 = por %p84, %p85
      %p88 = scmp.ne.s32.totalorder %s73, %s87
      %p89 = scmp.eq.s32.totalorder %s26, 0
      %p90 = por %p88, %p89
      %s92 = sadd.s32 %s91, 1
      %p95 = scmp.eq.s32.totalorder %s20, 1
      %p96 = scmp.ne.s32.totalorder %s91, %s93
      %p97 = scmp.eq.s32.totalorder %s20, 0
      %p98 = por %p96, %p97
      %p99 = scmp.ne.s32.totalorder %s91, %s93
      %p100 = scmp.eq.s32.totalorder %s25, 1
      %p101 = por %p99, %p100
      %p102 = scmp.ne.s32.totalorder %s93, %s94
      %p103 = scmp.eq.s32.totalorder %s25, 0
      %p104 = por %p102, %p103
      %p105 = scmp.ne.s32.totalorder %s93, %s94
      %p106 = scmp.eq.s32.totalorder %s26, 1
      %p107 = por %p105, %p106
      %p109 = scmp.ne.s32.totalorder %s94, %s108
      %p110 = scmp.eq.s32.totalorder %s26, 0
      %p111 = por %p109, %p110
      %s112 = ssub.s32 %s20, %s27
      %p113 = scmp.eq.s32.totalorder %s112, 0
      %s115 = sadd.s32 %s114, 1
      %s116 = scalar_select %p113, %s114, %s115
      %p119 = pneg %p113
      %p120 = scmp.eq.s32.totalorder %s20, 1
      %p121 = por %p119, %p120
      %p122 = scmp.ne.s32.totalorder %s114, %s117
      %p123 = scmp.eq.s32.totalorder %s20, 0
      %p124 = por %p122, %p123
      %p125 = scmp.ne.s32.totalorder %s114, %s117
      %p126 = scmp.eq.s32.totalorder %s25, 1
      %p127 = por %p125, %p126
      %p128 = scmp.ne.s32.totalorder %s117, %s118
      %p129 = scmp.eq.s32.totalorder %s25, 0
      %p130 = por %p128, %p129
      %p131 = scmp.ne.s32.totalorder %s117, %s118
      %p132 = scmp.eq.s32.totalorder %s26, 1
      %p133 = por %p131, %p132
      %p135 = scmp.ne.s32.totalorder %s118, %s134
      %p136 = scmp.eq.s32.totalorder %s26, 0
      %p137 = por %p135, %p136
      %s138 = ssub.s32 %s20, %s27
      %p139 = scmp.eq.s32.totalorder %s138, 0
      %s141 = sadd.s32 %s140, 1
      %s142 = scalar_select %p139, %s140, %s141
      %p145 = pneg %p139
      %p146 = scmp.eq.s32.totalorder %s20, 1
      %p147 = por %p145, %p146
      %p148 = scmp.ne.s32.totalorder %s140, %s143
      %p149 = scmp.eq.s32.totalorder %s20, 0
      %p150 = por %p148, %p149
      %p151 = scmp.ne.s32.totalorder %s140, %s143
      %p152 = scmp.eq.s32.totalorder %s25, 1
      %p153 = por %p151, %p152
      %p154 = scmp.ne.s32.totalorder %s143, %s144
      %p155 = scmp.eq.s32.totalorder %s25, 0
      %p156 = por %p154, %p155
      %p157 = scmp.ne.s32.totalorder %s143, %s144
      %p158 = scmp.eq.s32.totalorder %s26, 1
      %p159 = por %p157, %p158
      %p161 = scmp.ne.s32.totalorder %s144, %s160
      %p162 = scmp.eq.s32.totalorder %s26, 0
      %p163 = por %p161, %p162
      %s164 = ssub.s32 %s20, %s27
      %p165 = scmp.eq.s32.totalorder %s164, 0
      %s167 = sadd.s32 %s166, 1
      %s168 = scalar_select %p165, %s166, %s167
      %p171 = pneg %p165
      %p172 = scmp.eq.s32.totalorder %s20, 1
      %p173 = por %p171, %p172
      %p174 = scmp.ne.s32.totalorder %s166, %s169
      %p175 = scmp.eq.s32.totalorder %s20, 0
      %p176 = por %p174, %p175
      %p177 = scmp.ne.s32.totalorder %s166, %s169
      %p178 = scmp.eq.s32.totalorder %s25, 1
      %p179 = por %p177, %p178
      %p180 = scmp.ne.s32.totalorder %s169, %s170
      %p181 = scmp.eq.s32.totalorder %s25, 0
      %p182 = por %p180, %p181
      %p183 = scmp.ne.s32.totalorder %s169, %s170
      %p184 = scmp.eq.s32.totalorder %s26, 1
      %p185 = por %p183, %p184
      %p187 = scmp.ne.s32.totalorder %s170, %s186
      %p188 = scmp.eq.s32.totalorder %s26, 0
      %p189 = por %p187, %p188
      %s190 = ssub.s32 %s20, %s27
      %p191 = scmp.eq.s32.totalorder %s190, 0
      %s193 = sadd.s32 %s192, 1
      %s194 = scalar_select %p191, %s192, %s193
      %p197 = pneg %p191
      %p198 = scmp.eq.s32.totalorder %s20, 1
      %p199 = por %p197, %p198
      %p200 = scmp.ne.s32.totalorder %s192, %s195
      %p201 = scmp.eq.s32.totalorder %s20, 0
      %p202 = por %p200, %p201
      %p203 = scmp.ne.s32.totalorder %s192, %s195
      %p204 = scmp.eq.s32.totalorder %s25, 1
      %p205 = por %p203, %p204
      %p206 = scmp.ne.s32.totalorder %s195, %s196
      %p207 = scmp.eq.s32.totalorder %s25, 0
      %p208 = por %p206, %p207
      %p209 = scmp.ne.s32.totalorder %s195, %s196
      %p210 = scmp.eq.s32.totalorder %s26, 1
      %p211 = por %p209, %p210
      %p213 = scmp.ne.s32.totalorder %s196, %s212
      %p214 = scmp.eq.s32.totalorder %s26, 0
      %p215 = por %p213, %p214
      %s216 = ssub.s32 %s20, %s27
      %p217 = scmp.eq.s32.totalorder %s216, 0
      %s219 = sadd.s32 %s218, 1
      %s220 = scalar_select %p217, %s218, %s219
      %p223 = pneg %p217
      %p224 = scmp.eq.s32.totalorder %s20, 1
      %p225 = por %p223, %p224
      %p226 = scmp.ne.s32.totalorder %s218, %s221
      %p227 = scmp.eq.s32.totalorder %s20, 0
      %p228 = por %p226, %p227
      %p229 = scmp.ne.s32.totalorder %s218, %s221
      %p230 = scmp.eq.s32.totalorder %s25, 1
      %p231 = por %p229, %p230
      %p232 = scmp.ne.s32.totalorder %s221, %s222
      %p233 = scmp.eq.s32.totalorder %s25, 0
      %p234 = por %p232, %p233
      %p235 = scmp.ne.s32.totalorder %s221, %s222
      %p236 = scmp.eq.s32.totalorder %s26, 1
      %p237 = por %p235, %p236
      %p239 = scmp.ne.s32.totalorder %s222, %s238
      %p240 = scmp.eq.s32.totalorder %s26, 0
      %p241 = por %p239, %p240
      %s242 = ssub.s32 %s20, %s27
      %p243 = scmp.eq.s32.totalorder %s242, 0
      %s245 = sadd.s32 %s244, 1
      %s246 = scalar_select %p243, %s244, %s245
      %p249 = pneg %p243
      %p250 = scmp.eq.s32.totalorder %s20, 1
      %p251 = por %p249, %p250
      %p252 = scmp.ne.s32.totalorder %s244, %s247
      %p253 = scmp.eq.s32.totalorder %s20, 0
      %p254 = por %p252, %p253
      %p255 = scmp.ne.s32.totalorder %s244, %s247
      %p256 = scmp.eq.s32.totalorder %s25, 1
      %p257 = por %p255, %p256
      %p258 = scmp.ne.s32.totalorder %s247, %s248
      %p259 = scmp.eq.s32.totalorder %s25, 0
      %p260 = por %p258, %p259
      %p261 = scmp.ne.s32.totalorder %s247, %s248
      %p262 = scmp.eq.s32.totalorder %s26, 1
      %p263 = por %p261, %p262
      %p265 = scmp.ne.s32.totalorder %s248, %s264
      %p266 = scmp.eq.s32.totalorder %s26, 0
      %p267 = por %p265, %p266
      %p268 = scmp.le.s32.totalorder 1, %s20
      %p269 = scmp.lt.s32.totalorder %s20, 3
      %p270 = pnand %p268, %p269
      %p271 = pneg %p270
      // Predicated region
      $region9: #{tpu_custom_call.1} parent=5 // pred_check
        _
      $region10: #{tpu_custom_call.1} parent=5 // pred_check_branch
        %273 = sbr.rel (%p270) target = $region12
      $region11: #{tpu_custom_call.1} parent=5 // pred_region
        %s274 = ssub.s32 %s20, 1
        // Predicated region
        $region13: #{tpu_custom_call.1} parent=11 // pred_check
          %p275 = pneg %p41
        $region14: #{tpu_custom_call.1} parent=11 // pred_check_branch
          %277 = sbr.rel (%p275) target = $region16
        $region15: #{tpu_custom_call.1} parent=11 // pred_region
          _
        $region16: #{tpu_custom_call.1} parent=11 // pred_fallthru
          _
        // Predicated region
        $region17: #{tpu_custom_call.1} parent=11 // pred_check
          %p278 = pneg %p62
        $region18: #{tpu_custom_call.1} parent=11 // pred_check_branch
          %280 = sbr.rel (%p278) target = $region20
        $region19: #{tpu_custom_call.1} parent=11 // pred_region
          _
        $region20: #{tpu_custom_call.1} parent=11 // pred_fallthru
          _
        // Predicated region
        $region21: #{tpu_custom_call.1} parent=11 // pred_check
          %p281 = pneg %p83
        $region22: #{tpu_custom_call.1} parent=11 // pred_check_branch
          %283 = sbr.rel (%p281) target = $region24
        $region23: #{tpu_custom_call.1} parent=11 // pred_region
          _
        $region24: #{tpu_custom_call.1} parent=11 // pred_fallthru
          _
        // Predicated region
        $region25: #{tpu_custom_call.1} parent=11 // pred_check
          %p284 = pneg %p104
        $region26: #{tpu_custom_call.1} parent=11 // pred_check_branch
          %286 = sbr.rel (%p284) target = $region28
        $region27: #{tpu_custom_call.1} parent=11 // pred_region
          %s288 = ssub.s32 16, 16
          %289 = vsyncadd [#allocation3], %s288
          %s291 = sshll.u32 [#allocation2], 4
          %s292 = int_to_ptr.vmem [resolvable:$true] %s291
          %294 = dma.hbm_to_vmem [thread:$0]  %s3, 16, %s292, [#allocation3]
        $region28: #{tpu_custom_call.1} parent=11 // pred_fallthru
          _
      $region12: #{tpu_custom_call.1} parent=5 // pred_fallthru
        _
      %p295 = scmp.lt.s32.totalorder %s20, 2
      // Predicated region
      $region29: #{tpu_custom_call.1} parent=5 // pred_check
        %p296 = pneg %p295
      $region30: #{tpu_custom_call.1} parent=5 // pred_check_branch
        %298 = sbr.rel (%p296) target = $region32
      $region31: #{tpu_custom_call.1} parent=5 // pred_region
        // Predicated region
        $region33: #{tpu_custom_call.1} parent=31 // pred_check
          %p299 = pneg %p124
        $region34: #{tpu_custom_call.1} parent=31 // pred_check_branch
          %301 = sbr.rel (%p299) target = $region36
        $region35: #{tpu_custom_call.1} parent=31 // pred_region
          %s302 = sand.u32 %s20, 1
          %s303 = scalar_lea.sflag [#allocation5], %s302
          %s304 = sand.u32 %s114, 1
          %s305 = smul.addr %s304, 8
          %s306 = scalar_lea.vmem [#allocation4], %s305
          %s308 = ssub.s32 128, 128
          %309 = vsyncadd %s303, %s308
          %s310 = smul.addr %s20, 128
          %s311 = scalar_lea.hbm %s4, %s310
          %s313 = sshll.u32 %s306, 4
          %s314 = int_to_ptr.vmem [resolvable:$true] %s313
          %316 = dma.hbm_to_vmem [thread:$0]  %s311, 128, %s314, %s303
        $region36: #{tpu_custom_call.1} parent=31 // pred_fallthru
          _
        // Predicated region
        $region37: #{tpu_custom_call.1} parent=31 // pred_check
          %p317 = pneg %p150
        $region38: #{tpu_custom_call.1} parent=31 // pred_check_branch
          %319 = sbr.rel (%p317) target = $region40
        $region39: #{tpu_custom_call.1} parent=31 // pred_region
          %p320 = scmp.lt.s32.totalorder %s20, 1
          %s321 = scalar_select %p320, %s20, 1
          %s322 = smul.addr %s321, 8
          %s323 = scalar_lea.vmem %s5, %s322
        $region40: #{tpu_custom_call.1} parent=31 // pred_fallthru
          _
        // Predicated region
        $region41: #{tpu_custom_call.1} parent=31 // pred_check
          %p324 = pneg %p176
        $region42: #{tpu_custom_call.1} parent=31 // pred_check_branch
          %326 = sbr.rel (%p324) target = $region44
        $region43: #{tpu_custom_call.1} parent=31 // pred_region
          %s327 = sand.u32 %s20, 1
          %s328 = scalar_lea.sflag [#allocation5], %s327
          %s329 = sand.u32 %s166, 1
          %s330 = smul.addr %s329, 8
          %s331 = scalar_lea.vmem [#allocation6], %s330
          %s333 = ssub.s32 128, 128
          %334 = vsyncadd %s328, %s333
          %s335 = smul.addr %s20, 128
          %s336 = scalar_lea.hbm %s6, %s335
          %s338 = sshll.u32 %s331, 4
          %s339 = int_to_ptr.vmem [resolvable:$true] %s338
          %341 = dma.hbm_to_vmem [thread:$0]  %s336, 128, %s339, %s328
        $region44: #{tpu_custom_call.1} parent=31 // pred_fallthru
          _
      $region32: #{tpu_custom_call.1} parent=5 // pred_fallthru
        _
      %p342 = scmp.le.s32.totalorder 1, %s20
      %p343 = scmp.lt.s32.totalorder %s20, 3
      %p344 = pnand %p342, %p343
      %p345 = pneg %p344
      // Predicated region
      $region45: #{tpu_custom_call.1} parent=5 // pred_check
        _
      $region46: #{tpu_custom_call.1} parent=5 // pred_check_branch
        %347 = sbr.rel (%p344) target = $region48
      $region47: #{tpu_custom_call.1} parent=5 // pred_region
        %s348 = ssub.s32 %s20, 1
        // Predicated region
        $region49: #{tpu_custom_call.1} parent=47 // pred_check
          %p349 = pneg %p104
        $region50: #{tpu_custom_call.1} parent=47 // pred_check_branch
          %351 = sbr.rel (%p349) target = $region52
        $region51: #{tpu_custom_call.1} parent=47 // pred_region
          %352 = dma.done [#allocation3], 16
        $region52: #{tpu_custom_call.1} parent=47 // pred_fallthru
          _
        %s353 = sand.u32 %s25, 1
        %s354 = scalar_lea.sflag [#allocation5], %s353
        %s355 = sand.u32 %s117, 1
        %s356 = smul.addr %s355, 8
        %s357 = scalar_lea.vmem [#allocation4], %s356
        // Predicated region
        $region53: #{tpu_custom_call.1} parent=47 // pred_check
          %p358 = pneg %p130
        $region54: #{tpu_custom_call.1} parent=47 // pred_check_branch
          %360 = sbr.rel (%p358) target = $region56
        $region55: #{tpu_custom_call.1} parent=47 // pred_region
          %361 = dma.done %s354, 128
        $region56: #{tpu_custom_call.1} parent=47 // pred_fallthru
          _
        %s362 = sand.u32 %s25, 1
        %s363 = scalar_lea.sflag [#allocation5], %s362
        %s364 = sand.u32 %s169, 1
        %s365 = smul.addr %s364, 8
        %s366 = scalar_lea.vmem [#allocation6], %s365
        // Predicated region
        $region57: #{tpu_custom_call.1} parent=47 // pred_check
          %p367 = pneg %p182
        $region58: #{tpu_custom_call.1} parent=47 // pred_check_branch
          %369 = sbr.rel (%p367) target = $region60
        $region59: #{tpu_custom_call.1} parent=47 // pred_region
          %370 = dma.done %s363, 128
        $region60: #{tpu_custom_call.1} parent=47 // pred_fallthru
          _
        %p371 = pneg %p41
        %p372 = pneg %p38
        %p373 = pneg %p62
        %p374 = pneg %p59
        %p375 = pneg %p83
        %p376 = pneg %p80
        %p377 = pneg %p104
        %p378 = pneg %p101
        %s379 = sand.u32 %s25, 1
        %s380 = scalar_lea.sflag [#allocation5], %s379
        %s381 = sand.u32 %s117, 1
        %s382 = smul.addr %s381, 8
        %s383 = scalar_lea.vmem [#allocation4], %s382
        %p384 = pneg %p130
        %p385 = pneg %p127
        %p386 = scmp.lt.s32.totalorder %s25, 1
        %s387 = scalar_select %p386, %s25, 1
        %s388 = smul.addr %s387, 8
        %s389 = scalar_lea.vmem %s5, %s388
        %p390 = pneg %p156
        %p391 = pneg %p153
        %s392 = sand.u32 %s25, 1
        %s393 = scalar_lea.sflag [#allocation5], %s392
        %s394 = sand.u32 %s169, 1
        %s395 = smul.addr %s394, 8
        %s396 = scalar_lea.vmem [#allocation6], %s395
        %p397 = pneg %p182
        %p398 = pneg %p179
        %p399 = pneg %p208
        %p400 = pneg %p205
        %p401 = scmp.lt.s32.totalorder %s25, 1
        %s402 = scalar_select %p401, %s25, 1
        %s403 = smul.addr %s402, 8
        %s404 = scalar_lea.vmem %s7, %s403
        %p405 = pneg %p234
        %p406 = pneg %p231
        %p407 = scmp.lt.s32.totalorder %s25, 1
        %s408 = scalar_select %p407, %s25, 1
        %s409 = smul.addr %s408, 8
        %s410 = scalar_lea.vmem %s8, %s409
        %p411 = pneg %p260
        %p412 = pneg %p257
        %p413 = scmp.lt.s32.totalorder %s25, 1
        %s414 = scalar_select %p413, %s25, 1
        %s415 = smul.addr %s414, 8
        %s416 = scalar_lea.vmem %s9, %s415
        %p417 = scmp.lt.s32.totalorder %s25, 1
        %s418 = scalar_select %p417, %s25, 1
        %s419 = smul.addr %s418, 8
        %s420 = scalar_lea.vmem %s5, %s419
        %p421 = scmp.lt.s32.totalorder %s25, 1
        %s422 = scalar_select %p421, %s25, 1
        %s423 = smul.addr %s422, 8
        %s424 = scalar_lea.vmem %s7, %s423
        %p425 = scmp.lt.s32.totalorder %s25, 1
        %s426 = scalar_select %p425, %s25, 1
        %s427 = smul.addr %s426, 8
        %s428 = scalar_lea.vmem %s8, %s427
        %p429 = scmp.lt.s32.totalorder %s25, 1
        %s430 = scalar_select %p429, %s25, 1
        %s431 = smul.addr %s430, 8
        %s432 = scalar_lea.vmem %s9, %s431
        %v433 = vld [vmem:[%s0] sm:$0xff]
        %v434 = vld [vmem:[%s0 + $0x8] sm:$0xff]
        %v435 = vld [vmem:[%s0 + $0x10] sm:$0xff]
        %v436 = vld [vmem:[%s0 + $0x18] sm:$0xff]
        %v437 = vld [vmem:[%s0 + $0x20] sm:$0xff]
        %v438 = vld [vmem:[%s0 + $0x28] sm:$0xff]
        %v439 = vld [vmem:[%s0 + $0x30] sm:$0xff]
        %v440 = vld [vmem:[%s0 + $0x38] sm:$0xff]
        %v441 = vld [vmem:[%s0 + $0x40] sm:$0xff]
        %v442 = vld [vmem:[%s0 + $0x48] sm:$0xff]
        %v443 = vld [vmem:[%s0 + $0x50] sm:$0xff]
        %v444 = vld [vmem:[%s0 + $0x58] sm:$0xff]
        %v445 = vld [vmem:[%s0 + $0x60] sm:$0xff]
        %v446 = vld [vmem:[%s0 + $0x68] sm:$0xff]
        %v447 = vld [vmem:[%s0 + $0x70] sm:$0xff]
        %v448 = vld [vmem:[%s0 + $0x78] sm:$0xff]
        %v449 = vld [vmem:[%s2] sm:$0xff]
        %v450 = vld [vmem:[%s2 + $0x8] sm:$0xff]
        %v451 = vld [vmem:[%s2 + $0x10] sm:$0xff]
        %v452 = vld [vmem:[%s2 + $0x18] sm:$0xff]
        %v453 = vld [vmem:[%s2 + $0x20] sm:$0xff]
        %v454 = vld [vmem:[%s2 + $0x28] sm:$0xff]
        %v455 = vld [vmem:[%s2 + $0x30] sm:$0xff]
        %v456 = vld [vmem:[%s2 + $0x38] sm:$0xff]
        %v457 = vld [vmem:[%s2 + $0x40] sm:$0xff]
        %v458 = vld [vmem:[%s2 + $0x48] sm:$0xff]
        %v459 = vld [vmem:[%s2 + $0x50] sm:$0xff]
        %v460 = vld [vmem:[%s2 + $0x58] sm:$0xff]
        %v461 = vld [vmem:[%s2 + $0x60] sm:$0xff]
        %v462 = vld [vmem:[%s2 + $0x68] sm:$0xff]
        %v463 = vld [vmem:[%s2 + $0x70] sm:$0xff]
        %v464 = vld [vmem:[%s2 + $0x78] sm:$0xff]
        %v465 = vld [vmem:[%s1] sm:$0x1]
        %v466 = vld [vmem:[#allocation2] sm:$0x1]
        %v467 = vld [vmem:[%s357] sm:$0xff]
        %v469 = vlaneseq
        %v470 = vshrl.u32 %v469, 7
        %v471 = vsub.s32 0, %v470
        %v472 = vrot.slane %v465, %v471
        %474 = vmatprep.subr.mxu0 0.0
        %475 = vmatpush1.msra.mxu0 %v448
        %476 = vmatprep.subr.mxu0 0.0
        %477 = vmatpush1.msra.mxu0 %v447
        %478 = vmatprep.subr.mxu0 0.0
        %479 = vmatpush1.msra.mxu0 %v446
        %480 = vmatprep.subr.mxu0 0.0
        %481 = vmatpush1.msra.mxu0 %v445
        %482 = vmatprep.subr.mxu0 0.0
        %483 = vmatpush1.msra.mxu0 %v444
        %484 = vmatprep.subr.mxu0 0.0
        %485 = vmatpush1.msra.mxu0 %v443
        %486 = vmatprep.subr.mxu0 0.0
        %487 = vmatpush1.msra.mxu0 %v442
        %488 = vmatprep.subr.mxu0 0.0
        %489 = vmatpush1.msra.mxu0 %v441
        %490 = vmatprep.subr.mxu0 0.0
        %491 = vmatpush1.msra.mxu0 %v440
        %492 = vmatprep.subr.mxu0 0.0
        %493 = vmatpush1.msra.mxu0 %v439
        %494 = vmatprep.subr.mxu0 0.0
        %495 = vmatpush1.msra.mxu0 %v438
        %496 = vmatprep.subr.mxu0 0.0
        %497 = vmatpush1.msra.mxu0 %v437
        %498 = vmatprep.subr.mxu0 0.0
        %499 = vmatpush1.msra.mxu0 %v436
        %500 = vmatprep.subr.mxu0 0.0
        %501 = vmatpush1.msra.mxu0 %v435
        %502 = vmatprep.subr.mxu0 0.0
        %503 = vmatpush1.msra.mxu0 %v434
        %504 = vmatprep.subr.mxu0 0.0
        %505 = vmatpush1.msra.mxu0 %v433
        %506 = vmatprep.subr.mxu0 0.0
        %507 = vmatpush2.msra.mxu0 0.0
        %508 = vmatprep.subr.mxu0 0.0
        %509 = vmatpush2.msra.mxu0 0.0
        %510 = vmatprep.subr.mxu0 0.0
        %511 = vmatpush2.msra.mxu0 0.0
        %512 = vmatprep.subr.mxu0 0.0
        %513 = vmatpush2.msra.mxu0 0.0
        %514 = vmatprep.subr.mxu0 0.0
        %515 = vmatpush2.msra.mxu0 0.0
        %516 = vmatprep.subr.mxu0 0.0
        %517 = vmatpush2.msra.mxu0 0.0
        %518 = vmatprep.subr.mxu0 0.0
        %519 = vmatpush2.msra.mxu0 0.0
        %520 = vmatprep.subr.mxu0 0.0
        %521 = vmatpush2.msra.mxu0 0.0
        %522 = vmatprep.subr.mxu0 0.0
        %523 = vmatpush2.msra.mxu0 0.0
        %524 = vmatprep.subr.mxu0 0.0
        %525 = vmatpush2.msra.mxu0 0.0
        %526 = vmatprep.subr.mxu0 0.0
        %527 = vmatpush2.msra.mxu0 0.0
        %528 = vmatprep.subr.mxu0 0.0
        %529 = vmatpush2.msra.mxu0 0.0
        %530 = vmatprep.subr.mxu0 0.0
        %531 = vmatpush2.msra.mxu0 0.0
        %532 = vmatprep.subr.mxu0 0.0
        %533 = vmatpush2.msra.mxu0 0.0
        %534 = vmatprep.subr.mxu0 0.0
        %535 = vmatpush2.msra.mxu0 0.0
        %536 = vmatprep.subr.mxu0 0.0
        %537 = vmatpush2.msra.mxu0 0.0
        %538 = vmatprep.mubr.f32.mxu0 0.0
        %539 = vmatmul.mubr.f32.gmra.mxu0 %v467
        %v540 = vpop.f32.mrf.mxu0
        %v541 = vadd.f32 %v472, %v540
        %v542 = vpop.f32.mrf.mxu0
        %543 = vdwg.mxu0
        %v544 = vmax.f32 %v541, 0.0
        %v546 = vlaneseq
        %v547 = vshrl.u32 %v546, 7
        %v548 = vsub.s32 0, %v547
        %v549 = vrot.slane %v466, %v548
        %551 = vmatprep.subr.mxu0 0.0
        %552 = vmatpush1.msra.mxu0 %v464
        %553 = vmatprep.subr.mxu0 0.0
        %554 = vmatpush1.msra.mxu0 %v463
        %555 = vmatprep.subr.mxu0 0.0
        %556 = vmatpush1.msra.mxu0 %v462
        %557 = vmatprep.subr.mxu0 0.0
        %558 = vmatpush1.msra.mxu0 %v461
        %559 = vmatprep.subr.mxu0 0.0
        %560 = vmatpush1.msra.mxu0 %v460
        %561 = vmatprep.subr.mxu0 0.0
        %562 = vmatpush1.msra.mxu0 %v459
        %563 = vmatprep.subr.mxu0 0.0
        %564 = vmatpush1.msra.mxu0 %v458
        %565 = vmatprep.subr.mxu0 0.0
        %566 = vmatpush1.msra.mxu0 %v457
        %567 = vmatprep.subr.mxu0 0.0
        %568 = vmatpush1.msra.mxu0 %v456
        %569 = vmatprep.subr.mxu0 0.0
        %570 = vmatpush1.msra.mxu0 %v455
        %571 = vmatprep.subr.mxu0 0.0
        %572 = vmatpush1.msra.mxu0 %v454
        %573 = vmatprep.subr.mxu0 0.0
        %574 = vmatpush1.msra.mxu0 %v453
        %575 = vmatprep.subr.mxu0 0.0
        %576 = vmatpush1.msra.mxu0 %v452
        %577 = vmatprep.subr.mxu0 0.0
        %578 = vmatpush1.msra.mxu0 %v451
        %579 = vmatprep.subr.mxu0 0.0
        %580 = vmatpush1.msra.mxu0 %v450
        %581 = vmatprep.subr.mxu0 0.0
        %582 = vmatpush1.msra.mxu0 %v449
        %583 = vmatprep.subr.mxu0 0.0
        %584 = vmatpush2.msra.mxu0 0.0
        %585 = vmatprep.subr.mxu0 0.0
        %586 = vmatpush2.msra.mxu0 0.0
        %587 = vmatprep.subr.mxu0 0.0
        %588 = vmatpush2.msra.mxu0 0.0
        %589 = vmatprep.subr.mxu0 0.0
        %590 = vmatpush2.msra.mxu0 0.0
        %591 = vmatprep.subr.mxu0 0.0
        %592 = vmatpush2.msra.mxu0 0.0
        %593 = vmatprep.subr.mxu0 0.0
        %594 = vmatpush2.msra.mxu0 0.0
        %595 = vmatprep.subr.mxu0 0.0
        %596 = vmatpush2.msra.mxu0 0.0
        %597 = vmatprep.subr.mxu0 0.0
        %598 = vmatpush2.msra.mxu0 0.0
        %599 = vmatprep.subr.mxu0 0.0
        %600 = vmatpush2.msra.mxu0 0.0
        %601 = vmatprep.subr.mxu0 0.0
        %602 = vmatpush2.msra.mxu0 0.0
        %603 = vmatprep.subr.mxu0 0.0
        %604 = vmatpush2.msra.mxu0 0.0
        %605 = vmatprep.subr.mxu0 0.0
        %606 = vmatpush2.msra.mxu0 0.0
        %607 = vmatprep.subr.mxu0 0.0
        %608 = vmatpush2.msra.mxu0 0.0
        %609 = vmatprep.subr.mxu0 0.0
        %610 = vmatpush2.msra.mxu0 0.0
        %611 = vmatprep.subr.mxu0 0.0
        %612 = vmatpush2.msra.mxu0 0.0
        %613 = vmatprep.subr.mxu0 0.0
        %614 = vmatpush2.msra.mxu0 0.0
        %615 = vmatprep.mubr.f32.mxu0 0.0
        %616 = vmatmul.mubr.f32.gmra.mxu0 %v544
        %v617 = vpop.f32.mrf.mxu0
        %v618 = vadd.f32 %v549, %v617
        %v619 = vpop.f32.mrf.mxu0
        %620 = vdwg.mxu0
        %vm621 = vcmask 64512
        %622 = vst.msk [vmem:[%s424] sm:$0xff] %vm621, %v618
        %v623 = vld [vmem:[%s420] sm:$0xff]
        %624 = vmatprep.subr.mxu0 0.0
        %625 = vmatpush1.msra.mxu0 %v448
        %626 = vmatprep.subr.mxu0 0.0
        %627 = vmatpush1.msra.mxu0 %v447
        %628 = vmatprep.subr.mxu0 0.0
        %629 = vmatpush1.msra.mxu0 %v446
        %630 = vmatprep.subr.mxu0 0.0
        %631 = vmatpush1.msra.mxu0 %v445
        %632 = vmatprep.subr.mxu0 0.0
        %633 = vmatpush1.msra.mxu0 %v444
        %634 = vmatprep.subr.mxu0 0.0
        %635 = vmatpush1.msra.mxu0 %v443
        %636 = vmatprep.subr.mxu0 0.0
        %637 = vmatpush1.msra.mxu0 %v442
        %638 = vmatprep.subr.mxu0 0.0
        %639 = vmatpush1.msra.mxu0 %v441
        %640 = vmatprep.subr.mxu0 0.0
        %641 = vmatpush1.msra.mxu0 %v440
        %642 = vmatprep.subr.mxu0 0.0
        %643 = vmatpush1.msra.mxu0 %v439
        %644 = vmatprep.subr.mxu0 0.0
        %645 = vmatpush1.msra.mxu0 %v438
        %646 = vmatprep.subr.mxu0 0.0
        %647 = vmatpush1.msra.mxu0 %v437
        %648 = vmatprep.subr.mxu0 0.0
        %649 = vmatpush1.msra.mxu0 %v436
        %650 = vmatprep.subr.mxu0 0.0
        %651 = vmatpush1.msra.mxu0 %v435
        %652 = vmatprep.subr.mxu0 0.0
        %653 = vmatpush1.msra.mxu0 %v434
        %654 = vmatprep.subr.mxu0 0.0
        %655 = vmatpush1.msra.mxu0 %v433
        %656 = vmatprep.subr.mxu0 0.0
        %657 = vmatpush2.msra.mxu0 0.0
        %658 = vmatprep.subr.mxu0 0.0
        %659 = vmatpush2.msra.mxu0 0.0
        %660 = vmatprep.subr.mxu0 0.0
        %661 = vmatpush2.msra.mxu0 0.0
        %662 = vmatprep.subr.mxu0 0.0
        %663 = vmatpush2.msra.mxu0 0.0
        %664 = vmatprep.subr.mxu0 0.0
        %665 = vmatpush2.msra.mxu0 0.0
        %666 = vmatprep.subr.mxu0 0.0
        %667 = vmatpush2.msra.mxu0 0.0
        %668 = vmatprep.subr.mxu0 0.0
        %669 = vmatpush2.msra.mxu0 0.0
        %670 = vmatprep.subr.mxu0 0.0
        %671 = vmatpush2.msra.mxu0 0.0
        %672 = vmatprep.subr.mxu0 0.0
        %673 = vmatpush2.msra.mxu0 0.0
        %674 = vmatprep.subr.mxu0 0.0
        %675 = vmatpush2.msra.mxu0 0.0
        %676 = vmatprep.subr.mxu0 0.0
        %677 = vmatpush2.msra.mxu0 0.0
        %678 = vmatprep.subr.mxu0 0.0
        %679 = vmatpush2.msra.mxu0 0.0
        %680 = vmatprep.subr.mxu0 0.0
        %681 = vmatpush2.msra.mxu0 0.0
        %682 = vmatprep.subr.mxu0 0.0
        %683 = vmatpush2.msra.mxu0 0.0
        %684 = vmatprep.subr.mxu0 0.0
        %685 = vmatpush2.msra.mxu0 0.0
        %686 = vmatprep.subr.mxu0 0.0
        %687 = vmatpush2.msra.mxu0 0.0
        %688 = vmatprep.mubr.f32.mxu0 0.0
        %689 = vmatmul.mubr.f32.gmra.mxu0 %v623
        %v690 = vpop.f32.mrf.mxu0
        %v691 = vadd.f32 %v472, %v690
        %v692 = vpop.f32.mrf.mxu0
        %693 = vdwg.mxu0
        %v694 = vmax.f32 %v691, 0.0
        %695 = vmatprep.subr.mxu0 0.0
        %696 = vmatpush1.msra.mxu0 %v464
        %697 = vmatprep.subr.mxu0 0.0
        %698 = vmatpush1.msra.mxu0 %v463
        %699 = vmatprep.subr.mxu0 0.0
        %700 = vmatpush1.msra.mxu0 %v462
        %701 = vmatprep.subr.mxu0 0.0
        %702 = vmatpush1.msra.mxu0 %v461
        %703 = vmatprep.subr.mxu0 0.0
        %704 = vmatpush1.msra.mxu0 %v460
        %705 = vmatprep.subr.mxu0 0.0
        %706 = vmatpush1.msra.mxu0 %v459
        %707 = vmatprep.subr.mxu0 0.0
        %708 = vmatpush1.msra.mxu0 %v458
        %709 = vmatprep.subr.mxu0 0.0
        %710 = vmatpush1.msra.mxu0 %v457
        %711 = vmatprep.subr.mxu0 0.0
        %712 = vmatpush1.msra.mxu0 %v456
        %713 = vmatprep.subr.mxu0 0.0
        %714 = vmatpush1.msra.mxu0 %v455
        %715 = vmatprep.subr.mxu0 0.0
        %716 = vmatpush1.msra.mxu0 %v454
        %717 = vmatprep.subr.mxu0 0.0
        %718 = vmatpush1.msra.mxu0 %v453
        %719 = vmatprep.subr.mxu0 0.0
        %720 = vmatpush1.msra.mxu0 %v452
        %721 = vmatprep.subr.mxu0 0.0
        %722 = vmatpush1.msra.mxu0 %v451
        %723 = vmatprep.subr.mxu0 0.0
        %724 = vmatpush1.msra.mxu0 %v450
        %725 = vmatprep.subr.mxu0 0.0
        %726 = vmatpush1.msra.mxu0 %v449
        %727 = vmatprep.subr.mxu0 0.0
        %728 = vmatpush2.msra.mxu0 0.0
        %729 = vmatprep.subr.mxu0 0.0
        %730 = vmatpush2.msra.mxu0 0.0
        %731 = vmatprep.subr.mxu0 0.0
        %732 = vmatpush2.msra.mxu0 0.0
        %733 = vmatprep.subr.mxu0 0.0
        %734 = vmatpush2.msra.mxu0 0.0
        %735 = vmatprep.subr.mxu0 0.0
        %736 = vmatpush2.msra.mxu0 0.0
        %737 = vmatprep.subr.mxu0 0.0
        %738 = vmatpush2.msra.mxu0 0.0
        %739 = vmatprep.subr.mxu0 0.0
        %740 = vmatpush2.msra.mxu0 0.0
        %741 = vmatprep.subr.mxu0 0.0
        %742 = vmatpush2.msra.mxu0 0.0
        %743 = vmatprep.subr.mxu0 0.0
        %744 = vmatpush2.msra.mxu0 0.0
        %745 = vmatprep.subr.mxu0 0.0
        %746 = vmatpush2.msra.mxu0 0.0
        %747 = vmatprep.subr.mxu0 0.0
        %748 = vmatpush2.msra.mxu0 0.0
        %749 = vmatprep.subr.mxu0 0.0
        %750 = vmatpush2.msra.mxu0 0.0
        %751 = vmatprep.subr.mxu0 0.0
        %752 = vmatpush2.msra.mxu0 0.0
        %753 = vmatprep.subr.mxu0 0.0
        %754 = vmatpush2.msra.mxu0 0.0
        %755 = vmatprep.subr.mxu0 0.0
        %756 = vmatpush2.msra.mxu0 0.0
        %757 = vmatprep.subr.mxu0 0.0
        %758 = vmatpush2.msra.mxu0 0.0
        %759 = vmatprep.mubr.f32.mxu0 0.0
        %760 = vmatmul.mubr.f32.gmra.mxu0 %v694
        %v761 = vpop.f32.mrf.mxu0
        %v762 = vadd.f32 %v549, %v761
        %v763 = vpop.f32.mrf.mxu0
        %764 = vdwg.mxu0
        %765 = vst.msk [vmem:[%s428] sm:$0xff] %vm621, %v762
        %v766 = vld [vmem:[%s366] sm:$0xff]
        %767 = vmatprep.subr.mxu0 0.0
        %768 = vmatpush1.msra.mxu0 %v448
        %769 = vmatprep.subr.mxu0 0.0
        %770 = vmatpush1.msra.mxu0 %v447
        %771 = vmatprep.subr.mxu0 0.0
        %772 = vmatpush1.msra.mxu0 %v446
        %773 = vmatprep.subr.mxu0 0.0
        %774 = vmatpush1.msra.mxu0 %v445
        %775 = vmatprep.subr.mxu0 0.0
        %776 = vmatpush1.msra.mxu0 %v444
        %777 = vmatprep.subr.mxu0 0.0
        %778 = vmatpush1.msra.mxu0 %v443
        %779 = vmatprep.subr.mxu0 0.0
        %780 = vmatpush1.msra.mxu0 %v442
        %781 = vmatprep.subr.mxu0 0.0
        %782 = vmatpush1.msra.mxu0 %v441
        %783 = vmatprep.subr.mxu0 0.0
        %784 = vmatpush1.msra.mxu0 %v440
        %785 = vmatprep.subr.mxu0 0.0
        %786 = vmatpush1.msra.mxu0 %v439
        %787 = vmatprep.subr.mxu0 0.0
        %788 = vmatpush1.msra.mxu0 %v438
        %789 = vmatprep.subr.mxu0 0.0
        %790 = vmatpush1.msra.mxu0 %v437
        %791 = vmatprep.subr.mxu0 0.0
        %792 = vmatpush1.msra.mxu0 %v436
        %793 = vmatprep.subr.mxu0 0.0
        %794 = vmatpush1.msra.mxu0 %v435
        %795 = vmatprep.subr.mxu0 0.0
        %796 = vmatpush1.msra.mxu0 %v434
        %797 = vmatprep.subr.mxu0 0.0
        %798 = vmatpush1.msra.mxu0 %v433
        %799 = vmatprep.subr.mxu0 0.0
        %800 = vmatpush2.msra.mxu0 0.0
        %801 = vmatprep.subr.mxu0 0.0
        %802 = vmatpush2.msra.mxu0 0.0
        %803 = vmatprep.subr.mxu0 0.0
        %804 = vmatpush2.msra.mxu0 0.0
        %805 = vmatprep.subr.mxu0 0.0
        %806 = vmatpush2.msra.mxu0 0.0
        %807 = vmatprep.subr.mxu0 0.0
        %808 = vmatpush2.msra.mxu0 0.0
        %809 = vmatprep.subr.mxu0 0.0
        %810 = vmatpush2.msra.mxu0 0.0
        %811 = vmatprep.subr.mxu0 0.0
        %812 = vmatpush2.msra.mxu0 0.0
        %813 = vmatprep.subr.mxu0 0.0
        %814 = vmatpush2.msra.mxu0 0.0
        %815 = vmatprep.subr.mxu0 0.0
        %816 = vmatpush2.msra.mxu0 0.0
        %817 = vmatprep.subr.mxu0 0.0
        %818 = vmatpush2.msra.mxu0 0.0
        %819 = vmatprep.subr.mxu0 0.0
        %820 = vmatpush2.msra.mxu0 0.0
        %821 = vmatprep.subr.mxu0 0.0
        %822 = vmatpush2.msra.mxu0 0.0
        %823 = vmatprep.subr.mxu0 0.0
        %824 = vmatpush2.msra.mxu0 0.0
        %825 = vmatprep.subr.mxu0 0.0
        %826 = vmatpush2.msra.mxu0 0.0
        %827 = vmatprep.subr.mxu0 0.0
        %828 = vmatpush2.msra.mxu0 0.0
        %829 = vmatprep.subr.mxu0 0.0
        %830 = vmatpush2.msra.mxu0 0.0
        %831 = vmatprep.mubr.f32.mxu0 0.0
        %832 = vmatmul.mubr.f32.gmra.mxu0 %v766
        %v833 = vpop.f32.mrf.mxu0
        %v834 = vadd.f32 %v472, %v833
        %v835 = vpop.f32.mrf.mxu0
        %836 = vdwg.mxu0
        %v837 = vmax.f32 %v834, 0.0
        %838 = vmatprep.subr.mxu0 0.0
        %839 = vmatpush1.msra.mxu0 %v464
        %840 = vmatprep.subr.mxu0 0.0
        %841 = vmatpush1.msra.mxu0 %v463
        %842 = vmatprep.subr.mxu0 0.0
        %843 = vmatpush1.msra.mxu0 %v462
        %844 = vmatprep.subr.mxu0 0.0
        %845 = vmatpush1.msra.mxu0 %v461
        %846 = vmatprep.subr.mxu0 0.0
        %847 = vmatpush1.msra.mxu0 %v460
        %848 = vmatprep.subr.mxu0 0.0
        %849 = vmatpush1.msra.mxu0 %v459
        %850 = vmatprep.subr.mxu0 0.0
        %851 = vmatpush1.msra.mxu0 %v458
        %852 = vmatprep.subr.mxu0 0.0
        %853 = vmatpush1.msra.mxu0 %v457
        %854 = vmatprep.subr.mxu0 0.0
        %855 = vmatpush1.msra.mxu0 %v456
        %856 = vmatprep.subr.mxu0 0.0
        %857 = vmatpush1.msra.mxu0 %v455
        %858 = vmatprep.subr.mxu0 0.0
        %859 = vmatpush1.msra.mxu0 %v454
        %860 = vmatprep.subr.mxu0 0.0
        %861 = vmatpush1.msra.mxu0 %v453
        %862 = vmatprep.subr.mxu0 0.0
        %863 = vmatpush1.msra.mxu0 %v452
        %864 = vmatprep.subr.mxu0 0.0
        %865 = vmatpush1.msra.mxu0 %v451
        %866 = vmatprep.subr.mxu0 0.0
        %867 = vmatpush1.msra.mxu0 %v450
        %868 = vmatprep.subr.mxu0 0.0
        %869 = vmatpush1.msra.mxu0 %v449
        %870 = vmatprep.subr.mxu0 0.0
        %871 = vmatpush2.msra.mxu0 0.0
        %872 = vmatprep.subr.mxu0 0.0
        %873 = vmatpush2.msra.mxu0 0.0
        %874 = vmatprep.subr.mxu0 0.0
        %875 = vmatpush2.msra.mxu0 0.0
        %876 = vmatprep.subr.mxu0 0.0
        %877 = vmatpush2.msra.mxu0 0.0
        %878 = vmatprep.subr.mxu0 0.0
        %879 = vmatpush2.msra.mxu0 0.0
        %880 = vmatprep.subr.mxu0 0.0
        %881 = vmatpush2.msra.mxu0 0.0
        %882 = vmatprep.subr.mxu0 0.0
        %883 = vmatpush2.msra.mxu0 0.0
        %884 = vmatprep.subr.mxu0 0.0
        %885 = vmatpush2.msra.mxu0 0.0
        %886 = vmatprep.subr.mxu0 0.0
        %887 = vmatpush2.msra.mxu0 0.0
        %888 = vmatprep.subr.mxu0 0.0
        %889 = vmatpush2.msra.mxu0 0.0
        %890 = vmatprep.subr.mxu0 0.0
        %891 = vmatpush2.msra.mxu0 0.0
        %892 = vmatprep.subr.mxu0 0.0
        %893 = vmatpush2.msra.mxu0 0.0
        %894 = vmatprep.subr.mxu0 0.0
        %895 = vmatpush2.msra.mxu0 0.0
        %896 = vmatprep.subr.mxu0 0.0
        %897 = vmatpush2.msra.mxu0 0.0
        %898 = vmatprep.subr.mxu0 0.0
        %899 = vmatpush2.msra.mxu0 0.0
        %900 = vmatprep.subr.mxu0 0.0
        %901 = vmatpush2.msra.mxu0 0.0
        %902 = vmatprep.mubr.f32.mxu0 0.0
        %903 = vmatmul.mubr.f32.gmra.mxu0 %v837
        %v904 = vpop.f32.mrf.mxu0
        %v905 = vadd.f32 %v549, %v904
        %v906 = vpop.f32.mrf.mxu0
        %907 = vdwg.mxu0
        %908 = vst.msk [vmem:[%s432] sm:$0xff] %vm621, %v905
        %p909 = scmp.lt.s32.totalorder %s25, 1
        %s910 = scalar_select %p909, %s25, 1
        %s911 = smul.addr %s910, 8
        %s912 = scalar_lea.vmem %s7, %s911
        %p913 = scmp.lt.s32.totalorder %s25, 1
        %s914 = scalar_select %p913, %s25, 1
        %s915 = smul.addr %s914, 8
        %s916 = scalar_lea.vmem %s8, %s915
        %p917 = scmp.lt.s32.totalorder %s25, 1
        %s918 = scalar_select %p917, %s25, 1
        %s919 = smul.addr %s918, 8
        %s920 = scalar_lea.vmem %s9, %s919
        // Predicated region
        $region61: #{tpu_custom_call.1} parent=47 // pred_check
          %p921 = pneg %p205
        $region62: #{tpu_custom_call.1} parent=47 // pred_check_branch
          %923 = sbr.rel (%p921) target = $region64
        $region63: #{tpu_custom_call.1} parent=47 // pred_region
          _
        $region64: #{tpu_custom_call.1} parent=47 // pred_fallthru
          _
        // Predicated region
        $region65: #{tpu_custom_call.1} parent=47 // pred_check
          %p924 = pneg %p231
        $region66: #{tpu_custom_call.1} parent=47 // pred_check_branch
          %926 = sbr.rel (%p924) target = $region68
        $region67: #{tpu_custom_call.1} parent=47 // pred_region
          _
        $region68: #{tpu_custom_call.1} parent=47 // pred_fallthru
          _
        // Predicated region
        $region69: #{tpu_custom_call.1} parent=47 // pred_check
          %p927 = pneg %p257
        $region70: #{tpu_custom_call.1} parent=47 // pred_check_branch
          %929 = sbr.rel (%p927) target = $region72
        $region71: #{tpu_custom_call.1} parent=47 // pred_region
          _
        $region72: #{tpu_custom_call.1} parent=47 // pred_fallthru
          _
      $region48: #{tpu_custom_call.1} parent=5 // pred_fallthru
        _
      %p930 = scmp.le.s32.totalorder 2, %s20
      // Predicated region
      $region73: #{tpu_custom_call.1} parent=5 // pred_check
        %p931 = pneg %p930
      $region74: #{tpu_custom_call.1} parent=5 // pred_check_branch
        %933 = sbr.rel (%p931) target = $region76
      $region75: #{tpu_custom_call.1} parent=5 // pred_region
        %s934 = ssub.s32 %s20, 2
        // Predicated region
        $region77: #{tpu_custom_call.1} parent=75 // pred_check
          %p935 = pneg %p211
        $region78: #{tpu_custom_call.1} parent=75 // pred_check_branch
          %937 = sbr.rel (%p935) target = $region80
        $region79: #{tpu_custom_call.1} parent=75 // pred_region
          %p938 = scmp.lt.s32.totalorder %s26, 1
          %s939 = scalar_select %p938, %s26, 1
          %s940 = smul.addr %s939, 8
          %s941 = scalar_lea.vmem %s7, %s940
        $region80: #{tpu_custom_call.1} parent=75 // pred_fallthru
          _
        // Predicated region
        $region81: #{tpu_custom_call.1} parent=75 // pred_check
          %p942 = pneg %p237
        $region82: #{tpu_custom_call.1} parent=75 // pred_check_branch
          %944 = sbr.rel (%p942) target = $region84
        $region83: #{tpu_custom_call.1} parent=75 // pred_region
          %p945 = scmp.lt.s32.totalorder %s26, 1
          %s946 = scalar_select %p945, %s26, 1
          %s947 = smul.addr %s946, 8
          %s948 = scalar_lea.vmem %s8, %s947
        $region84: #{tpu_custom_call.1} parent=75 // pred_fallthru
          _
        // Predicated region
        $region85: #{tpu_custom_call.1} parent=75 // pred_check
          %p949 = pneg %p263
        $region86: #{tpu_custom_call.1} parent=75 // pred_check_branch
          %951 = sbr.rel (%p949) target = $region88
        $region87: #{tpu_custom_call.1} parent=75 // pred_region
          %p952 = scmp.lt.s32.totalorder %s26, 1
          %s953 = scalar_select %p952, %s26, 1
          %s954 = smul.addr %s953, 8
          %s955 = scalar_lea.vmem %s9, %s954
        $region88: #{tpu_custom_call.1} parent=75 // pred_fallthru
          _
      $region76: #{tpu_custom_call.1} parent=5 // pred_fallthru
        _
    $region6: #{tpu_custom_call.1} parent=1 // loop_footer
      %s24 = sadd.s32 1, %s20
    $region7: #{tpu_custom_call.1} parent=1 // loop_footer_branch
      %19 = sbr.rel target = $region3
    $region8: #{tpu_custom_call.1} parent=1 // loop_exit
      _
    %956 = vsyncpa [#allocation3], 1
    %s957 = scalar_lea.sflag [#allocation3], 1
    %958 = vsyncpa %s957, 1
    %959 = vsyncpa [#allocation5], 1
    %s960 = scalar_lea.sflag [#allocation5], 1
    %961 = vsyncpa %s960, 1

</llo_original>
